<compile_context>
chip_gen: v7x
topology: tpu7x:2x2x1
jax: 0.10.0
libtpu: 0.0.40
codegen_flags: <defaults>
</compile_context>

<pallas_src>
import jax
import jax.numpy as jnp
import numpy as np
from jax import lax
from jax.experimental import pallas as pl
from jax.experimental.pallas import tpu as pltpu

# --- small problem sizes consistent with the module -------------------------
B = 8              # batch
DIM_IN = 32        # input embedding dim
DIM_OUT = 16       # projection output dim (proj.shape[0])
N_CLASSES = 10     # W0.shape[0]
N_CLASSES_PAD = 128  # lane-dense padded class dim (multiple of 128)
MAX_LOGIT_SCALE = 1000.0
EPS = 1e-12        # F.normalize default eps

# contract last dim of lhs with last dim of rhs: lhs @ rhs.T without any transpose
_DOT_T = (((1,), (1,)), ((), ()))


def _inv_l2(sumsq):
    # 1 / max(||v||, eps)  ==  rsqrt(max(sumsq, eps^2))   (EUP rsqrt, no VPU divide)
    return lax.rsqrt(jnp.maximum(sumsq, EPS * EPS))


def head_kernel(scale_ref, x_ref, proj_ref, w0_ref, r_ref, out_ref):
    # Everything fits in one VMEM block; single grid step does the full forward.
    x = x_ref[...].astype(jnp.float32)                                  # [B, DIM_IN]
    inv_x = _inv_l2(jnp.sum(x * x, axis=-1, keepdims=True))
    # fold the (precomputed) logit scale into the normalization factor
    xn = x * (scale_ref[0] * inv_x)                                     # [B, DIM_IN]

    proj = proj_ref[...].astype(jnp.float32)                            # [DIM_OUT, DIM_IN]
    xp = lax.dot_general(xn, proj, _DOT_T,
                         preferred_element_type=jnp.float32)            # [B, DIM_OUT]

    w0 = w0_ref[...].astype(jnp.float32)                                # [N_CLASSES_PAD, DIM_OUT]
    r = r_ref[...].astype(jnp.float32)                                  # [DIM_OUT, DIM_OUT]
    wr = lax.dot_general(w0, r, _DOT_T,
                         preferred_element_type=jnp.float32)            # F.linear(W0, R)
    w = wr * _inv_l2(jnp.sum(wr * wr, axis=-1, keepdims=True))          # [N_CLASSES_PAD, DIM_OUT]

    out_ref[...] = lax.dot_general(xp, w, _DOT_T,
                                   preferred_element_type=jnp.float32
                                   ).astype(out_ref.dtype)              # [B, N_CLASSES_PAD]


def embedding_transform_head(x, proj, w0, r, log_logit_scale):
    # scale is data-independent of x: compute in the wrapper, fold into the kernel input
    scale = jnp.minimum(jnp.exp(log_logit_scale), MAX_LOGIT_SCALE).astype(jnp.float32)

    # pad class dim up to 128 for a lane-dense output store; zero rows stay zero through
    # the normalize (rsqrt clamp), so padded logits are exactly 0 and get sliced off.
    n_classes = w0.shape[0]
    w0_pad = jnp.zeros((N_CLASSES_PAD, w0.shape[1]), dtype=w0.dtype).at[:n_classes].set(w0)

    grid_spec = pltpu.PrefetchScalarGridSpec(
        num_scalar_prefetch=1,                                           # scale -> SMEM
        grid=(1,),
        in_specs=[
            pl.BlockSpec((B, DIM_IN), lambda i, s: (0, 0)),              # x
            pl.BlockSpec((DIM_OUT, DIM_IN), lambda i, s: (0, 0)),        # proj
            pl.BlockSpec((N_CLASSES_PAD, DIM_OUT), lambda i, s: (0, 0)), # W0 (padded)
            pl.BlockSpec((DIM_OUT, DIM_OUT), lambda i, s: (0, 0)),       # linear weight R
        ],
        out_specs=pl.BlockSpec((B, N_CLASSES_PAD), lambda i, s: (0, 0)),
    )
    out_pad = pl.pallas_call(
        head_kernel,
        out_shape=jax.ShapeDtypeStruct((B, N_CLASSES_PAD), jnp.float32),
        grid_spec=grid_spec,
        compiler_params=pltpu.CompilerParams(
            dimension_semantics=("arbitrary",)),
    )(scale, x, proj, w0_pad, r)
    return out_pad[:, :n_classes]


# --- pure-JAX reference (matches the PyTorch forward) ------------------------
def _l2_normalize_ref(v):
    nrm = jnp.sqrt(jnp.sum(v * v, axis=-1, keepdims=True))
    return v / jnp.maximum(nrm, EPS)


def reference_forward(x, proj, w0, r, log_logit_scale):
    xn = _l2_normalize_ref(x)
    xp = xn @ proj.T
    w = _l2_normalize_ref(w0 @ r.T)
    scale = jnp.minimum(jnp.exp(log_logit_scale[0]), MAX_LOGIT_SCALE)
    return scale * (xp @ w.T)


if __name__ == "__main__":
    key = jax.random.PRNGKey(0)
    k_x, k_proj, k_w0 = jax.random.split(key, 3)

    # example input
    x = jax.random.normal(k_x, (B, DIM_IN), dtype=jnp.float32)

    # --- deterministic parameter setup (mirrors __init__, plain JAX glue) ---
    # proj param = F.normalize(proj_raw, dim=-1)
    proj_raw = jax.random.normal(k_proj, (DIM_OUT, DIM_IN), dtype=jnp.float32)
    proj = _l2_normalize_ref(proj_raw)
    # W0 param = project(F.normalize(W0_raw, dim=-1)) = normalize(W0_raw) @ proj.T
    w0_raw = jax.random.normal(k_w0, (N_CLASSES, DIM_IN), dtype=jnp.float32)
    w0 = _l2_normalize_ref(w0_raw) @ proj.T                   # [N_CLASSES, DIM_OUT]
    # linear weight initialized to identity (init_identity), bias=False
    r = jnp.eye(DIM_OUT, dtype=jnp.float32)
    # log_logit_scale parameter (scalar), passed as shape-(1,) array
    log_logit_scale = jnp.array([2.5], dtype=jnp.float32)

    out = embedding_transform_head(x, proj, w0, r, log_logit_scale)
    out = jax.block_until_ready(out)

    ref = reference_forward(x, proj, w0, r, log_logit_scale)
    assert out.shape == (B, N_CLASSES)
    np.testing.assert_allclose(np.asarray(out), np.asarray(ref), rtol=1e-5, atol=1e-5)
    print("KERNEL_OK")
</pallas_src>

<mosaic_0001>
module attributes {stable_mosaic.version = 11 : i64} {
  func.func @head_kernel(%arg0: i32, %arg1: memref<1xf32, #tpu.memory_space<smem>>, %arg2: memref<8x32xf32, #tpu.memory_space<vmem>>, %arg3: memref<16x32xf32, #tpu.memory_space<vmem>>, %arg4: memref<128x16xf32, #tpu.memory_space<vmem>>, %arg5: memref<16x16xf32, #tpu.memory_space<vmem>>, %arg6: memref<8x128xf32, #tpu.memory_space<vmem>>) attributes {dimension_semantics = [#tpu.dimension_semantics<arbitrary>], iteration_bounds = array<i64: 1>, scalar_prefetch = 1 : i64, scratch_operands = 0 : i64, tpu.core_type = #tpu.core_type<tc>, window_params = [{pipeline_mode = #tpu.pipeline_mode<synchronous>, transform_indices = @transform_0, window_bounds = array<i64: 8, 32>}, {pipeline_mode = #tpu.pipeline_mode<synchronous>, transform_indices = @transform_1, window_bounds = array<i64: 16, 32>}, {pipeline_mode = #tpu.pipeline_mode<synchronous>, transform_indices = @transform_2, window_bounds = array<i64: 128, 16>}, {pipeline_mode = #tpu.pipeline_mode<synchronous>, transform_indices = @transform_3, window_bounds = array<i64: 16, 16>}, {pipeline_mode = #tpu.pipeline_mode<synchronous>, transform_indices = @transform_4, window_bounds = array<i64: 8, 128>}]} {
    %c0 = arith.constant 0 : index
    %c0_0 = arith.constant 0 : index
    %0 = vector.load %arg2[%c0, %c0_0] : memref<8x32xf32, #tpu.memory_space<vmem>>, vector<8x32xf32>
    %1 = arith.mulf %0, %0 : vector<8x32xf32>
    %cst = arith.constant dense<0.000000e+00> : vector<8xf32>
    %2 = vector.multi_reduction <add>, %1, %cst [1] : vector<8x32xf32> to vector<8xf32>
    %3 = vector.shape_cast %2 : vector<8xf32> to vector<8x1xf32>
    %cst_1 = arith.constant 1.000000e-24 : f32
    %4 = vector.broadcast %cst_1 : f32 to vector<8x1xf32>
    %5 = arith.maximumf %3, %4 : vector<8x1xf32>
    %6 = math.rsqrt %5 : vector<8x1xf32>
    %c0_2 = arith.constant 0 : index
    %7 = memref.load %arg1[%c0_2] : memref<1xf32, #tpu.memory_space<smem>>
    %8 = vector.broadcast %7 : f32 to vector<8x1xf32>
    %9 = arith.mulf %8, %6 : vector<8x1xf32>
    %10 = vector.broadcast %9 : vector<8x1xf32> to vector<8x32xf32>
    %11 = arith.mulf %0, %10 : vector<8x32xf32>
    %c0_3 = arith.constant 0 : index
    %c0_4 = arith.constant 0 : index
    %12 = vector.load %arg3[%c0_3, %c0_4] : memref<16x32xf32, #tpu.memory_space<vmem>>, vector<16x32xf32>
    %cst_5 = arith.constant dense<0.000000e+00> : vector<8x16xf32>
    %13 = tpu.matmul %11, %12, %cst_5 {dimension_numbers = #tpu.dot_dimension_numbers<[1], [1], [0], [0], [0, 0, 1, 0], [], []>} : vector<8x32xf32>, vector<16x32xf32>, vector<8x16xf32> -> vector<8x16xf32>
    %c0_6 = arith.constant 0 : index
    %c0_7 = arith.constant 0 : index
    %14 = vector.load %arg4[%c0_6, %c0_7] : memref<128x16xf32, #tpu.memory_space<vmem>>, vector<128x16xf32>
    %c0_8 = arith.constant 0 : index
    %c0_9 = arith.constant 0 : index
    %15 = vector.load %arg5[%c0_8, %c0_9] : memref<16x16xf32, #tpu.memory_space<vmem>>, vector<16x16xf32>
    %cst_10 = arith.constant dense<0.000000e+00> : vector<128x16xf32>
    %16 = tpu.matmul %14, %15, %cst_10 {dimension_numbers = #tpu.dot_dimension_numbers<[1], [1], [0], [0], [0, 0, 1, 0], [], []>} : vector<128x16xf32>, vector<16x16xf32>, vector<128x16xf32> -> vector<128x16xf32>
    %17 = arith.mulf %16, %16 : vector<128x16xf32>
    %cst_11 = arith.constant dense<0.000000e+00> : vector<128xf32>
    %18 = vector.multi_reduction <add>, %17, %cst_11 [1] : vector<128x16xf32> to vector<128xf32>
    %19 = vector.shape_cast %18 : vector<128xf32> to vector<128x1xf32>
    %cst_12 = arith.constant 1.000000e-24 : f32
    %20 = vector.broadcast %cst_12 : f32 to vector<128x1xf32>
    %21 = arith.maximumf %19, %20 : vector<128x1xf32>
    %22 = math.rsqrt %21 : vector<128x1xf32>
    %23 = vector.broadcast %22 : vector<128x1xf32> to vector<128x16xf32>
    %24 = arith.mulf %16, %23 : vector<128x16xf32>
    %cst_13 = arith.constant dense<0.000000e+00> : vector<8x128xf32>
    %25 = tpu.matmul %13, %24, %cst_13 {dimension_numbers = #tpu.dot_dimension_numbers<[1], [1], [0], [0], [0, 0, 1, 0], [], []>} : vector<8x16xf32>, vector<128x16xf32>, vector<8x128xf32> -> vector<8x128xf32>
    %c0_14 = arith.constant 0 : index
    %c0_15 = arith.constant 0 : index
    %26 = vector.load %arg6[%c0_14, %c0_15] : memref<8x128xf32, #tpu.memory_space<vmem>>, vector<8x128xf32>
    tpu.vector_store %arg6[%c0_14, %c0_15], %25 {strides = array<i32>} : memref<8x128xf32, #tpu.memory_space<vmem>>, vector<8x128xf32>,
    return
  }
  func.func @transform_0(%arg0: i32, %arg1: memref<1xf32, #tpu.memory_space<smem>>) -> (i32, i32) {
    %c0_i32 = arith.constant 0 : i32
    %c0_i32_0 = arith.constant 0 : i32
    %c0_i32_1 = arith.constant 0 : i32
    return %c0_i32, %c0_i32_0 : i32, i32
  }
  func.func @transform_1(%arg0: i32, %arg1: memref<1xf32, #tpu.memory_space<smem>>) -> (i32, i32) {
    %c0_i32 = arith.constant 0 : i32
    %c0_i32_0 = arith.constant 0 : i32
    %c0_i32_1 = arith.constant 0 : i32
    return %c0_i32, %c0_i32_0 : i32, i32
  }
  func.func @transform_2(%arg0: i32, %arg1: memref<1xf32, #tpu.memory_space<smem>>) -> (i32, i32) {
    %c0_i32 = arith.constant 0 : i32
    %c0_i32_0 = arith.constant 0 : i32
    %c0_i32_1 = arith.constant 0 : i32
    return %c0_i32, %c0_i32_0 : i32, i32
  }
  func.func @transform_3(%arg0: i32, %arg1: memref<1xf32, #tpu.memory_space<smem>>) -> (i32, i32) {
    %c0_i32 = arith.constant 0 : i32
    %c0_i32_0 = arith.constant 0 : i32
    %c0_i32_1 = arith.constant 0 : i32
    return %c0_i32, %c0_i32_0 : i32, i32
  }
  func.func @transform_4(%arg0: i32, %arg1: memref<1xf32, #tpu.memory_space<smem>>) -> (i32, i32) {
    %c0_i32 = arith.constant 0 : i32
    %c0_i32_0 = arith.constant 0 : i32
    %c0_i32_1 = arith.constant 0 : i32
    return %c0_i32, %c0_i32_0 : i32, i32
  }
}

</mosaic_0001>

<llo_original>
// kernel: tpu_custom_call.1
$region0: #{tpu_custom_call.1}
  #allocation0 [shape = 'u32[]', space=smem, size = 0x4, offset = 0x4, fixed_abs, tag = 'smem constant byte address 0x4 - core index']
  #allocation1 [shape = 'u32[144,128]{1,0:T(1,128)}', space=vmem, size = 0x12000, scoped, tag = 'internal scratch']
  #allocation2 [shape = 's32[1]{0}', space=sflag, size = 0x4, scoped, tag = 'scoped memory for tpu_custom_call.1']
  #allocation3 [shape = 'f32[1]{0:T(128)S(6)}', space=smem, size = 0x200, scoped, tag = 'prefetched SMEM operand 0']
  %s0 = inlined_call_operand.<no memory space> [shape: f32[1], index: 0, kind: input, shape index: {}]
  %s1 = inlined_call_operand.vmem [shape: f32[8,32], index: 1, kind: input, shape index: {}]
  %s2 = inlined_call_operand.vmem [shape: f32[16,32], index: 2, kind: input, shape index: {}]
  %s3 = inlined_call_operand.vmem [shape: f32[128,16], index: 3, kind: input, shape index: {}]
  %s4 = inlined_call_operand.vmem [shape: f32[16,16], index: 4, kind: input, shape index: {}]
  %s5 = inlined_call_operand.hbm [shape: f32[8,128], index: 5, kind: output, shape index: {}]
  %s6 = sld [smem:[#allocation0]]
  $region26: #{tpu_custom_call.1} parent=0
    _
  %s8 = ssub.s32 1, %s6
  %s9 = scalar_select 0, %s8, %s6
  %10 = sst [smem:[#allocation3]] %s0
  $region1: #{tpu_custom_call.1} parent=0
    #allocation4 [shape = 'u8[4096]{0}', space=vmem, size = 0x1000, scoped, tag = 'output window, operand 0, single buffered']
    #allocation5 [shape = 's32[1]{0}', space=sflag, size = 0x4, scoped, tag = 'scoped memory for tpu_custom_call.1']
    %11 = vsyncpa [#allocation5], 0
    // Predicated region
    $region2: #{tpu_custom_call.1} parent=1 // pred_check
      _
    $region3: #{tpu_custom_call.1} parent=1 // pred_check_branch
      %13 = sbr.rel (0) target = $region5
    $region4: #{tpu_custom_call.1} parent=1 // pred_region
      _
    $region5: #{tpu_custom_call.1} parent=1 // pred_fallthru
      _
    // Predicated region
    $region6: #{tpu_custom_call.1} parent=1 // pred_check
      _
    $region7: #{tpu_custom_call.1} parent=1 // pred_check_branch
      %15 = sbr.rel (0) target = $region9
    $region8: #{tpu_custom_call.1} parent=1 // pred_region
      _
    $region9: #{tpu_custom_call.1} parent=1 // pred_fallthru
      _
    // Predicated region
    $region10: #{tpu_custom_call.1} parent=1 // pred_check
      _
    $region11: #{tpu_custom_call.1} parent=1 // pred_check_branch
      %17 = sbr.rel (0) target = $region13
    $region12: #{tpu_custom_call.1} parent=1 // pred_region
      _
    $region13: #{tpu_custom_call.1} parent=1 // pred_fallthru
      _
    // Predicated region
    $region14: #{tpu_custom_call.1} parent=1 // pred_check
      _
    $region15: #{tpu_custom_call.1} parent=1 // pred_check_branch
      %19 = sbr.rel (0) target = $region17
    $region16: #{tpu_custom_call.1} parent=1 // pred_region
      _
    $region17: #{tpu_custom_call.1} parent=1 // pred_fallthru
      _
    %v20 = vld [vmem:[%s1] sm:$0xff]
    %v21 = vmul.f32 %v20, %v20
    %vm22 = vcmask 261120
    %v23 = vsel %vm22, %v21, 0.0
    %24 = vadd.xlane.f32.xlu0 %v23
    %v25 = vpop.xlane.xlu0 %24
    %v26 = vmax.f32 %v25, 1e-24
    %v27 = vrsqrt.pop %v26
    %s28 = sld [smem:[#allocation3]]
    %v29 = vstv %s28
    %v30 = vmul.f32 %v29, %v27
    %v31 = vmul.f32 %v20, %v30
    %v32 = vld [vmem:[%s2] sm:$0xff]
    %v33 = vld [vmem:[%s2 + $0x8] sm:$0xff]
    %v35 = vsel %vm22, %v31, 0
    %v38 = vsel %vm22, %v32, 0
    %v41 = vsel %vm22, %v33, 0
    %43 = vmatprep.subr.mxu0 0.0
    %44 = vmatpush1.xpose.msra.mxu0 %v38
    %45 = vmatprep.subr.mxu0 0.0
    %46 = vmatpush1.xpose.msra.mxu0 %v41
    %47 = vmatprep.subr.mxu0 0.0
    %48 = vmatpush1.xpose.msra.mxu0 0.0
    %49 = vmatprep.subr.mxu0 0.0
    %50 = vmatpush1.xpose.msra.mxu0 0.0
    %51 = vmatprep.subr.mxu0 0.0
    %52 = vmatpush1.xpose.msra.mxu0 0.0
    %53 = vmatprep.subr.mxu0 0.0
    %54 = vmatpush1.xpose.msra.mxu0 0.0
    %55 = vmatprep.subr.mxu0 0.0
    %56 = vmatpush1.xpose.msra.mxu0 0.0
    %57 = vmatprep.subr.mxu0 0.0
    %58 = vmatpush1.xpose.msra.mxu0 0.0
    %59 = vmatprep.subr.mxu0 0.0
    %60 = vmatpush1.xpose.msra.mxu0 0.0
    %61 = vmatprep.subr.mxu0 0.0
    %62 = vmatpush1.xpose.msra.mxu0 0.0
    %63 = vmatprep.subr.mxu0 0.0
    %64 = vmatpush1.xpose.msra.mxu0 0.0
    %65 = vmatprep.subr.mxu0 0.0
    %66 = vmatpush1.xpose.msra.mxu0 0.0
    %67 = vmatprep.subr.mxu0 0.0
    %68 = vmatpush1.xpose.msra.mxu0 0.0
    %69 = vmatprep.subr.mxu0 0.0
    %70 = vmatpush1.xpose.msra.mxu0 0.0
    %71 = vmatprep.subr.mxu0 0.0
    %72 = vmatpush1.xpose.msra.mxu0 0.0
    %73 = vmatprep.subr.mxu0 0.0
    %74 = vmatpush1.xpose.msra.mxu0 0.0
    %75 = vmatprep.subr.mxu0 0.0
    %76 = vmatpush1.xpose.msra.mxu0 0.0
    %77 = vmatprep.subr.mxu0 0.0
    %78 = vmatpush1.xpose.msra.mxu0 0.0
    %79 = vmatprep.subr.mxu0 0.0
    %80 = vmatpush1.xpose.msra.mxu0 0.0
    %81 = vmatprep.subr.mxu0 0.0
    %82 = vmatpush1.xpose.msra.mxu0 0.0
    %83 = vmatprep.subr.mxu0 0.0
    %84 = vmatpush1.xpose.msra.mxu0 0.0
    %85 = vmatprep.subr.mxu0 0.0
    %86 = vmatpush1.xpose.msra.mxu0 0.0
    %87 = vmatprep.subr.mxu0 0.0
    %88 = vmatpush1.xpose.msra.mxu0 0.0
    %89 = vmatprep.subr.mxu0 0.0
    %90 = vmatpush1.xpose.msra.mxu0 0.0
    %91 = vmatprep.subr.mxu0 0.0
    %92 = vmatpush1.xpose.msra.mxu0 0.0
    %93 = vmatprep.subr.mxu0 0.0
    %94 = vmatpush1.xpose.msra.mxu0 0.0
    %95 = vmatprep.subr.mxu0 0.0
    %96 = vmatpush1.xpose.msra.mxu0 0.0
    %97 = vmatprep.subr.mxu0 0.0
    %98 = vmatpush1.xpose.msra.mxu0 0.0
    %99 = vmatprep.subr.mxu0 0.0
    %100 = vmatpush1.xpose.msra.mxu0 0.0
    %101 = vmatprep.subr.mxu0 0.0
    %102 = vmatpush1.xpose.msra.mxu0 0.0
    %103 = vmatprep.subr.mxu0 0.0
    %104 = vmatpush1.xpose.msra.mxu0 0.0
    %105 = vmatprep.subr.mxu0 0.0
    %106 = vmatpush1.xpose.msra.mxu0 0.0
    %107 = vmatprep.mubr.f32.mxu0 0.0
    %108 = vmatmul.mubr.f32.gmra.mrb[0].mxu0 %v35
    %v109 = vpop.f32.mrb[0].mxu0
    %v110 = vadd.f32 0.0, %v109
    %v111 = vpop.f32.mrb[0].mxu0
    %112 = vdwg.mxu0
    %v113 = vld [vmem:[%s3] sm:$0xff]
    %v114 = vld [vmem:[%s3 + $0x8] sm:$0xff]
    %v115 = vld [vmem:[%s3 + $0x10] sm:$0xff]
    %v116 = vld [vmem:[%s3 + $0x18] sm:$0xff]
    %v117 = vld [vmem:[%s3 + $0x20] sm:$0xff]
    %v118 = vld [vmem:[%s3 + $0x28] sm:$0xff]
    %v119 = vld [vmem:[%s3 + $0x30] sm:$0xff]
    %v120 = vld [vmem:[%s3 + $0x38] sm:$0xff]
    %v121 = vld [vmem:[%s3 + $0x40] sm:$0xff]
    %v122 = vld [vmem:[%s3 + $0x48] sm:$0xff]
    %v123 = vld [vmem:[%s3 + $0x50] sm:$0xff]
    %v124 = vld [vmem:[%s3 + $0x58] sm:$0xff]
    %v125 = vld [vmem:[%s3 + $0x60] sm:$0xff]
    %v126 = vld [vmem:[%s3 + $0x68] sm:$0xff]
    %v127 = vld [vmem:[%s3 + $0x70] sm:$0xff]
    %v128 = vld [vmem:[%s3 + $0x78] sm:$0xff]
    %v129 = vld [vmem:[%s4] sm:$0xff]
    %v130 = vld [vmem:[%s4 + $0x8] sm:$0xff]
    %vm131 = vcmask 130048
    %v133 = vsel %vm131, %v113, 0
    %v136 = vsel %vm131, %v114, 0
    %v139 = vsel %vm131, %v115, 0
    %v142 = vsel %vm131, %v116, 0
    %v145 = vsel %vm131, %v117, 0
    %v148 = vsel %vm131, %v118, 0
    %v151 = vsel %vm131, %v119, 0
    %v154 = vsel %vm131, %v120, 0
    %v157 = vsel %vm131, %v121, 0
    %v160 = vsel %vm131, %v122, 0
    %v163 = vsel %vm131, %v123, 0
    %v166 = vsel %vm131, %v124, 0
    %v169 = vsel %vm131, %v125, 0
    %v172 = vsel %vm131, %v126, 0
    %v175 = vsel %vm131, %v127, 0
    %v178 = vsel %vm131, %v128, 0
    %v181 = vsel %vm131, %v129, 0
    %v184 = vsel %vm131, %v130, 0
    %186 = vmatprep.subr.mxu0 0.0
    %187 = vmatpush1.xpose.msra.mxu0 %v181
    %188 = vmatprep.subr.mxu0 0.0
    %189 = vmatpush1.xpose.msra.mxu0 %v184
    %190 = vmatprep.subr.mxu0 0.0
    %191 = vmatpush1.xpose.msra.mxu0 0.0
    %192 = vmatprep.subr.mxu0 0.0
    %193 = vmatpush1.xpose.msra.mxu0 0.0
    %194 = vmatprep.subr.mxu0 0.0
    %195 = vmatpush1.xpose.msra.mxu0 0.0
    %196 = vmatprep.subr.mxu0 0.0
    %197 = vmatpush1.xpose.msra.mxu0 0.0
    %198 = vmatprep.subr.mxu0 0.0
    %199 = vmatpush1.xpose.msra.mxu0 0.0
    %200 = vmatprep.subr.mxu0 0.0
    %201 = vmatpush1.xpose.msra.mxu0 0.0
    %202 = vmatprep.subr.mxu0 0.0
    %203 = vmatpush1.xpose.msra.mxu0 0.0
    %204 = vmatprep.subr.mxu0 0.0
    %205 = vmatpush1.xpose.msra.mxu0 0.0
    %206 = vmatprep.subr.mxu0 0.0
    %207 = vmatpush1.xpose.msra.mxu0 0.0
    %208 = vmatprep.subr.mxu0 0.0
    %209 = vmatpush1.xpose.msra.mxu0 0.0
    %210 = vmatprep.subr.mxu0 0.0
    %211 = vmatpush1.xpose.msra.mxu0 0.0
    %212 = vmatprep.subr.mxu0 0.0
    %213 = vmatpush1.xpose.msra.mxu0 0.0
    %214 = vmatprep.subr.mxu0 0.0
    %215 = vmatpush1.xpose.msra.mxu0 0.0
    %216 = vmatprep.subr.mxu0 0.0
    %217 = vmatpush1.xpose.msra.mxu0 0.0
    %218 = vmatprep.subr.mxu0 0.0
    %219 = vmatpush1.xpose.msra.mxu0 0.0
    %220 = vmatprep.subr.mxu0 0.0
    %221 = vmatpush1.xpose.msra.mxu0 0.0
    %222 = vmatprep.subr.mxu0 0.0
    %223 = vmatpush1.xpose.msra.mxu0 0.0
    %224 = vmatprep.subr.mxu0 0.0
    %225 = vmatpush1.xpose.msra.mxu0 0.0
    %226 = vmatprep.subr.mxu0 0.0
    %227 = vmatpush1.xpose.msra.mxu0 0.0
    %228 = vmatprep.subr.mxu0 0.0
    %229 = vmatpush1.xpose.msra.mxu0 0.0
    %230 = vmatprep.subr.mxu0 0.0
    %231 = vmatpush1.xpose.msra.mxu0 0.0
    %232 = vmatprep.subr.mxu0 0.0
    %233 = vmatpush1.xpose.msra.mxu0 0.0
    %234 = vmatprep.subr.mxu0 0.0
    %235 = vmatpush1.xpose.msra.mxu0 0.0
    %236 = vmatprep.subr.mxu0 0.0
    %237 = vmatpush1.xpose.msra.mxu0 0.0
    %238 = vmatprep.subr.mxu0 0.0
    %239 = vmatpush1.xpose.msra.mxu0 0.0
    %240 = vmatprep.subr.mxu0 0.0
    %241 = vmatpush1.xpose.msra.mxu0 0.0
    %242 = vmatprep.subr.mxu0 0.0
    %243 = vmatpush1.xpose.msra.mxu0 0.0
    %244 = vmatprep.subr.mxu0 0.0
    %245 = vmatpush1.xpose.msra.mxu0 0.0
    %246 = vmatprep.subr.mxu0 0.0
    %247 = vmatpush1.xpose.msra.mxu0 0.0
    %248 = vmatprep.subr.mxu0 0.0
    %249 = vmatpush1.xpose.msra.mxu0 0.0
    %250 = vmatprep.mubr.f32.mxu0 0.0
    %251 = vmatmul.mubr.f32.gmra.mrb[0].mxu0 %v133
    %v252 = vpop.f32.mrb[0].mxu0
    %v253 = vadd.f32 0.0, %v252
    %v254 = vpop.f32.mrb[0].mxu0
    %255 = vmatprep.mubr.f32.mxu0 0.0
    %256 = vmatmul.mubr.f32.gmra.mrb[0].mxu0 %v136
    %v257 = vpop.f32.mrb[0].mxu0
    %v258 = vadd.f32 0.0, %v257
    %v259 = vpop.f32.mrb[0].mxu0
    %260 = vmatprep.mubr.f32.mxu0 0.0
    %261 = vmatmul.mubr.f32.gmra.mrb[0].mxu0 %v139
    %v262 = vpop.f32.mrb[0].mxu0
    %v263 = vadd.f32 0.0, %v262
    %v264 = vpop.f32.mrb[0].mxu0
    %265 = vmatprep.mubr.f32.mxu0 0.0
    %266 = vmatmul.mubr.f32.gmra.mrb[0].mxu0 %v142
    %v267 = vpop.f32.mrb[0].mxu0
    %v268 = vadd.f32 0.0, %v267
    %v269 = vpop.f32.mrb[0].mxu0
    %270 = vmatprep.mubr.f32.mxu0 0.0
    %271 = vmatmul.mubr.f32.gmra.mrb[0].mxu0 %v145
    %v272 = vpop.f32.mrb[0].mxu0
    %v273 = vadd.f32 0.0, %v272
    %v274 = vpop.f32.mrb[0].mxu0
    %275 = vmatprep.mubr.f32.mxu0 0.0
    %276 = vmatmul.mubr.f32.gmra.mrb[0].mxu0 %v148
    %v277 = vpop.f32.mrb[0].mxu0
    %v278 = vadd.f32 0.0, %v277
    %v279 = vpop.f32.mrb[0].mxu0
    %280 = vmatprep.mubr.f32.mxu0 0.0
    %281 = vmatmul.mubr.f32.gmra.mrb[0].mxu0 %v151
    %v282 = vpop.f32.mrb[0].mxu0
    %v283 = vadd.f32 0.0, %v282
    %v284 = vpop.f32.mrb[0].mxu0
    %285 = vmatprep.mubr.f32.mxu0 0.0
    %286 = vmatmul.mubr.f32.gmra.mrb[0].mxu0 %v154
    %v287 = vpop.f32.mrb[0].mxu0
    %v288 = vadd.f32 0.0, %v287
    %v289 = vpop.f32.mrb[0].mxu0
    %290 = vmatprep.mubr.f32.mxu0 0.0
    %291 = vmatmul.mubr.f32.gmra.mrb[0].mxu0 %v157
    %v292 = vpop.f32.mrb[0].mxu0
    %v293 = vadd.f32 0.0, %v292
    %v294 = vpop.f32.mrb[0].mxu0
    %295 = vmatprep.mubr.f32.mxu0 0.0
    %296 = vmatmul.mubr.f32.gmra.mrb[0].mxu0 %v160
    %v297 = vpop.f32.mrb[0].mxu0
    %v298 = vadd.f32 0.0, %v297
    %v299 = vpop.f32.mrb[0].mxu0
    %300 = vmatprep.mubr.f32.mxu0 0.0
    %301 = vmatmul.mubr.f32.gmra.mrb[0].mxu0 %v163
    %v302 = vpop.f32.mrb[0].mxu0
    %v303 = vadd.f32 0.0, %v302
    %v304 = vpop.f32.mrb[0].mxu0
    %305 = vmatprep.mubr.f32.mxu0 0.0
    %306 = vmatmul.mubr.f32.gmra.mrb[0].mxu0 %v166
    %v307 = vpop.f32.mrb[0].mxu0
    %v308 = vadd.f32 0.0, %v307
    %v309 = vpop.f32.mrb[0].mxu0
    %310 = vmatprep.mubr.f32.mxu0 0.0
    %311 = vmatmul.mubr.f32.gmra.mrb[0].mxu0 %v169
    %v312 = vpop.f32.mrb[0].mxu0
    %v313 = vadd.f32 0.0, %v312
    %v314 = vpop.f32.mrb[0].mxu0
    %315 = vmatprep.mubr.f32.mxu0 0.0
    %316 = vmatmul.mubr.f32.gmra.mrb[0].mxu0 %v172
    %v317 = vpop.f32.mrb[0].mxu0
    %v318 = vadd.f32 0.0, %v317
    %v319 = vpop.f32.mrb[0].mxu0
    %320 = vmatprep.mubr.f32.mxu0 0.0
    %321 = vmatmul.mubr.f32.gmra.mrb[0].mxu0 %v175
    %v322 = vpop.f32.mrb[0].mxu0
    %v323 = vadd.f32 0.0, %v322
    %v324 = vpop.f32.mrb[0].mxu0
    %325 = vmatprep.mubr.f32.mxu0 0.0
    %326 = vmatmul.mubr.f32.gmra.mrb[0].mxu0 %v178
    %v327 = vpop.f32.mrb[0].mxu0
    %v328 = vadd.f32 0.0, %v327
    %v329 = vpop.f32.mrb[0].mxu0
    %330 = vdwg.mxu0
    %v331 = vmul.f32 %v253, %v253
    %v332 = vmul.f32 %v258, %v258
    %v333 = vmul.f32 %v263, %v263
    %v334 = vmul.f32 %v268, %v268
    %v335 = vmul.f32 %v273, %v273
    %v336 = vmul.f32 %v278, %v278
    %v337 = vmul.f32 %v283, %v283
    %v338 = vmul.f32 %v288, %v288
    %v339 = vmul.f32 %v293, %v293
    %v340 = vmul.f32 %v298, %v298
    %v341 = vmul.f32 %v303, %v303
    %v342 = vmul.f32 %v308, %v308
    %v343 = vmul.f32 %v313, %v313
    %v344 = vmul.f32 %v318, %v318
    %v345 = vmul.f32 %v323, %v323
    %v346 = vmul.f32 %v328, %v328
    %v347 = vsel %vm131, %v331, 0.0
    %348 = vadd.xlane.f32.xlu0 %v347
    %v349 = vpop.xlane.xlu0 %348
    %v350 = vsel %vm131, %v332, 0.0
    %351 = vadd.xlane.f32.xlu0 %v350
    %v352 = vpop.xlane.xlu0 %351
    %v353 = vsel %vm131, %v333, 0.0
    %354 = vadd.xlane.f32.xlu0 %v353
    %v355 = vpop.xlane.xlu0 %354
    %v356 = vsel %vm131, %v334, 0.0
    %357 = vadd.xlane.f32.xlu0 %v356
    %v358 = vpop.xlane.xlu0 %357
    %v359 = vsel %vm131, %v335, 0.0
    %360 = vadd.xlane.f32.xlu0 %v359
    %v361 = vpop.xlane.xlu0 %360
    %v362 = vsel %vm131, %v336, 0.0
    %363 = vadd.xlane.f32.xlu0 %v362
    %v364 = vpop.xlane.xlu0 %363
    %v365 = vsel %vm131, %v337, 0.0
    %366 = vadd.xlane.f32.xlu0 %v365
    %v367 = vpop.xlane.xlu0 %366
    %v368 = vsel %vm131, %v338, 0.0
    %369 = vadd.xlane.f32.xlu0 %v368
    %v370 = vpop.xlane.xlu0 %369
    %v371 = vsel %vm131, %v339, 0.0
    %372 = vadd.xlane.f32.xlu0 %v371
    %v373 = vpop.xlane.xlu0 %372
    %v374 = vsel %vm131, %v340, 0.0
    %375 = vadd.xlane.f32.xlu0 %v374
    %v376 = vpop.xlane.xlu0 %375
    %v377 = vsel %vm131, %v341, 0.0
    %378 = vadd.xlane.f32.xlu0 %v377
    %v379 = vpop.xlane.xlu0 %378
    %v380 = vsel %vm131, %v342, 0.0
    %381 = vadd.xlane.f32.xlu0 %v380
    %v382 = vpop.xlane.xlu0 %381
    %v383 = vsel %vm131, %v343, 0.0
    %384 = vadd.xlane.f32.xlu0 %v383
    %v385 = vpop.xlane.xlu0 %384
    %v386 = vsel %vm131, %v344, 0.0
    %387 = vadd.xlane.f32.xlu0 %v386
    %v388 = vpop.xlane.xlu0 %387
    %v389 = vsel %vm131, %v345, 0.0
    %390 = vadd.xlane.f32.xlu0 %v389
    %v391 = vpop.xlane.xlu0 %390
    %v392 = vsel %vm131, %v346, 0.0
    %393 = vadd.xlane.f32.xlu0 %v392
    %v394 = vpop.xlane.xlu0 %393
    %v395 = vmax.f32 %v349, 1e-24
    %v396 = vmax.f32 %v352, 1e-24
    %v397 = vmax.f32 %v355, 1e-24
    %v398 = vmax.f32 %v358, 1e-24
    %v399 = vmax.f32 %v361, 1e-24
    %v400 = vmax.f32 %v364, 1e-24
    %v401 = vmax.f32 %v367, 1e-24
    %v402 = vmax.f32 %v370, 1e-24
    %v403 = vmax.f32 %v373, 1e-24
    %v404 = vmax.f32 %v376, 1e-24
    %v405 = vmax.f32 %v379, 1e-24
    %v406 = vmax.f32 %v382, 1e-24
    %v407 = vmax.f32 %v385, 1e-24
    %v408 = vmax.f32 %v388, 1e-24
    %v409 = vmax.f32 %v391, 1e-24
    %v410 = vmax.f32 %v394, 1e-24
    %v411 = vrsqrt.pop %v395
    %v412 = vrsqrt.pop %v396
    %v413 = vrsqrt.pop %v397
    %v414 = vrsqrt.pop %v398
    %v415 = vrsqrt.pop %v399
    %v416 = vrsqrt.pop %v400
    %v417 = vrsqrt.pop %v401
    %v418 = vrsqrt.pop %v402
    %v419 = vrsqrt.pop %v403
    %v420 = vrsqrt.pop %v404
    %v421 = vrsqrt.pop %v405
    %v422 = vrsqrt.pop %v406
    %v423 = vrsqrt.pop %v407
    %v424 = vrsqrt.pop %v408
    %v425 = vrsqrt.pop %v409
    %v426 = vrsqrt.pop %v410
    %v427 = vmul.f32 %v253, %v411
    %v428 = vmul.f32 %v258, %v412
    %v429 = vmul.f32 %v263, %v413
    %v430 = vmul.f32 %v268, %v414
    %v431 = vmul.f32 %v273, %v415
    %v432 = vmul.f32 %v278, %v416
    %v433 = vmul.f32 %v283, %v417
    %v434 = vmul.f32 %v288, %v418
    %v435 = vmul.f32 %v293, %v419
    %v436 = vmul.f32 %v298, %v420
    %v437 = vmul.f32 %v303, %v421
    %v438 = vmul.f32 %v308, %v422
    %v439 = vmul.f32 %v313, %v423
    %v440 = vmul.f32 %v318, %v424
    %v441 = vmul.f32 %v323, %v425
    %v442 = vmul.f32 %v328, %v426
    %v444 = vsel %vm131, %v110, 0
    %v447 = vsel %vm131, %v427, 0
    %v450 = vsel %vm131, %v428, 0
    %v453 = vsel %vm131, %v429, 0
    %v456 = vsel %vm131, %v430, 0
    %v459 = vsel %vm131, %v431, 0
    %v462 = vsel %vm131, %v432, 0
    %v465 = vsel %vm131, %v433, 0
    %v468 = vsel %vm131, %v434, 0
    %v471 = vsel %vm131, %v435, 0
    %v474 = vsel %vm131, %v436, 0
    %v477 = vsel %vm131, %v437, 0
    %v480 = vsel %vm131, %v438, 0
    %v483 = vsel %vm131, %v439, 0
    %v486 = vsel %vm131, %v440, 0
    %v489 = vsel %vm131, %v441, 0
    %v492 = vsel %vm131, %v442, 0
    %494 = vmatprep.subr.mxu0 0.0
    %495 = vmatpush1.xpose.msra.mxu0 %v447
    %496 = vmatprep.subr.mxu0 0.0
    %497 = vmatpush1.xpose.msra.mxu0 %v450
    %498 = vmatprep.subr.mxu0 0.0
    %499 = vmatpush1.xpose.msra.mxu0 %v453
    %500 = vmatprep.subr.mxu0 0.0
    %501 = vmatpush1.xpose.msra.mxu0 %v456
    %502 = vmatprep.subr.mxu0 0.0
    %503 = vmatpush1.xpose.msra.mxu0 %v459
    %504 = vmatprep.subr.mxu0 0.0
    %505 = vmatpush1.xpose.msra.mxu0 %v462
    %506 = vmatprep.subr.mxu0 0.0
    %507 = vmatpush1.xpose.msra.mxu0 %v465
    %508 = vmatprep.subr.mxu0 0.0
    %509 = vmatpush1.xpose.msra.mxu0 %v468
    %510 = vmatprep.subr.mxu0 0.0
    %511 = vmatpush1.xpose.msra.mxu0 %v471
    %512 = vmatprep.subr.mxu0 0.0
    %513 = vmatpush1.xpose.msra.mxu0 %v474
    %514 = vmatprep.subr.mxu0 0.0
    %515 = vmatpush1.xpose.msra.mxu0 %v477
    %516 = vmatprep.subr.mxu0 0.0
    %517 = vmatpush1.xpose.msra.mxu0 %v480
    %518 = vmatprep.subr.mxu0 0.0
    %519 = vmatpush1.xpose.msra.mxu0 %v483
    %520 = vmatprep.subr.mxu0 0.0
    %521 = vmatpush1.xpose.msra.mxu0 %v486
    %522 = vmatprep.subr.mxu0 0.0
    %523 = vmatpush1.xpose.msra.mxu0 %v489
    %524 = vmatprep.subr.mxu0 0.0
    %525 = vmatpush1.xpose.msra.mxu0 %v492
    %526 = vmatprep.subr.mxu0 0.0
    %527 = vmatpush1.xpose.msra.mxu0 0.0
    %528 = vmatprep.subr.mxu0 0.0
    %529 = vmatpush1.xpose.msra.mxu0 0.0
    %530 = vmatprep.subr.mxu0 0.0
    %531 = vmatpush1.xpose.msra.mxu0 0.0
    %532 = vmatprep.subr.mxu0 0.0
    %533 = vmatpush1.xpose.msra.mxu0 0.0
    %534 = vmatprep.subr.mxu0 0.0
    %535 = vmatpush1.xpose.msra.mxu0 0.0
    %536 = vmatprep.subr.mxu0 0.0
    %537 = vmatpush1.xpose.msra.mxu0 0.0
    %538 = vmatprep.subr.mxu0 0.0
    %539 = vmatpush1.xpose.msra.mxu0 0.0
    %540 = vmatprep.subr.mxu0 0.0
    %541 = vmatpush1.xpose.msra.mxu0 0.0
    %542 = vmatprep.subr.mxu0 0.0
    %543 = vmatpush1.xpose.msra.mxu0 0.0
    %544 = vmatprep.subr.mxu0 0.0
    %545 = vmatpush1.xpose.msra.mxu0 0.0
    %546 = vmatprep.subr.mxu0 0.0
    %547 = vmatpush1.xpose.msra.mxu0 0.0
    %548 = vmatprep.subr.mxu0 0.0
    %549 = vmatpush1.xpose.msra.mxu0 0.0
    %550 = vmatprep.subr.mxu0 0.0
    %551 = vmatpush1.xpose.msra.mxu0 0.0
    %552 = vmatprep.subr.mxu0 0.0
    %553 = vmatpush1.xpose.msra.mxu0 0.0
    %554 = vmatprep.subr.mxu0 0.0
    %555 = vmatpush1.xpose.msra.mxu0 0.0
    %556 = vmatprep.subr.mxu0 0.0
    %557 = vmatpush1.xpose.msra.mxu0 0.0
    %558 = vmatprep.mubr.f32.mxu0 0.0
    %559 = vmatmul.mubr.f32.gmra.mrb[0].mxu0 %v444
    %v560 = vpop.f32.mrb[0].mxu0
    %v561 = vadd.f32 0.0, %v560
    %v562 = vpop.f32.mrb[0].mxu0
    %563 = vdwg.mxu0
    %564 = vst [vmem:[#allocation4] sm:$0xff] %v561
    // Predicated region
    $region18: #{tpu_custom_call.1} parent=1 // pred_check
      _
    $region19: #{tpu_custom_call.1} parent=1 // pred_check_branch
      %566 = sbr.rel (0) target = $region21
    $region20: #{tpu_custom_call.1} parent=1 // pred_region
      %s568 = ssub.s32 128, 128
      %569 = vsyncadd [#allocation5], %s568
      %s571 = sshll.u32 [#allocation4], 4
      %s572 = int_to_ptr.vmem [resolvable:$true] %s571
      %574 = dma.vmem_to_hbm [thread:$0]  %s572, 128, %s5, [#allocation5]
    $region21: #{tpu_custom_call.1} parent=1 // pred_fallthru
      _
    // Predicated region
    $region22: #{tpu_custom_call.1} parent=1 // pred_check
      _
    $region23: #{tpu_custom_call.1} parent=1 // pred_check_branch
      %576 = sbr.rel (0) target = $region25
    $region24: #{tpu_custom_call.1} parent=1 // pred_region
      %577 = dma.done [#allocation5], 128
    $region25: #{tpu_custom_call.1} parent=1 // pred_fallthru
      _
    %578 = vsyncpa [#allocation5], 1

</llo_original>
